<compile_context>
chip_gen: v6e
topology: v6e:2x2x1
jax: 0.10.0
libtpu: 0.0.40
codegen_flags: <defaults>
</compile_context>

<pallas_src>
import functools
import math

import jax
import jax.numpy as jnp
from jax.experimental import pallas as pl
from jax.experimental.pallas import tpu as pltpu


def _dwconv_s2_kernel(xp_ref, wv_ref, o_ref, *, mask_row0):
    """One (batch, channel-block) tile of the depthwise stride-2 3x3 conv.

    xp_ref: (1, 4, HP, LB)  parity planes; LB = cg * WP lanes, HP = padded Ho
    wv_ref: (9, LB)         per-lane filter taps (edge / pad lanes pre-zeroed)
    o_ref : (1, HP, LB)
    """
    f32 = jnp.float32

    # Load each parity plane exactly once.
    p00 = xp_ref[0, 0].astype(f32)        # x[2i+0, 2j+0]
    p01 = xp_ref[0, 1].astype(f32)        # x[2i+0, 2j+1]
    p10 = xp_ref[0, 2].astype(f32)        # x[2i+1, 2j+0]
    p11 = xp_ref[0, 3].astype(f32)        # x[2i+1, 2j+1]

    def wrow(t):                          # (1, LB) taps, t = 3*ki + kj
        return wv_ref[t:t + 1, :].astype(f32)

    # Lane-shifted P[1,1] (column j-1), shared by taps (0,0) and (2,0).
    q11 = pltpu.roll(p11, shift=1, axis=1)

    # --- top filter row (ki=0): compute on unshifted rows, shift down once --------
    top = p10 * wrow(1) + p11 * wrow(2) + q11 * wrow(0)
    top = pltpu.roll(top, shift=1, axis=0)          # row i reads row i-1
    if mask_row0:
        # Only needed when HP == Ho: the sublane wrap would otherwise pull in a
        # real data row instead of a zero pad row.
        row = jax.lax.broadcasted_iota(jnp.int32, top.shape, 0)
        top = jnp.where(row == 0, 0.0, top)

    # --- middle filter row (ki=1) ---------------------------------------------------
    acc = top + p00 * wrow(4) + p01 * wrow(5)
    acc = acc + pltpu.roll(p01, shift=1, axis=1) * wrow(3)

    # --- bottom filter row (ki=2) ---------------------------------------------------
    acc = acc + p10 * wrow(7) + p11 * wrow(8) + q11 * wrow(6)

    o_ref[0] = acc.astype(o_ref.dtype)


def _num_tensorcores():
    """Best-effort TensorCore-per-chip count (2 on v7x, 1 on v5e/v6e)."""
    try:
        dev = jax.devices()[0]
    except Exception:
        return 1
    n = getattr(dev, "num_cores", None)
    if isinstance(n, int) and n > 0:
        return n
    kind = (getattr(dev, "device_kind", "") or "").lower()
    return 2 if ("v7" in kind or "7x" in kind) else 1


def _channel_tiling(C, WP, min_blocks):
    """Return (Cpad, cg): pad channels to Cpad so the fused lane axis tiles into
    blocks of cg*WP lanes (a multiple of 128).  Prefer the largest cg that still
    yields >= min_blocks channel blocks; otherwise take one big block."""
    m = 128 // math.gcd(WP, 128)                  # cg must be a multiple of m
    Cpad = ((C + m - 1) // m) * m
    cands = [cg for cg in range(m, Cpad + 1, m) if Cpad % cg == 0]
    good = [cg for cg in cands if Cpad // cg >= min_blocks]
    cg = max(good) if good else max(cands)
    return Cpad, cg


@functools.partial(jax.jit, static_argnames=("min_blocks",))
def _dwconv_s2_impl(x, w, *, min_blocks):
    N, C, H, W = x.shape
    assert w.shape == (C, 1, 3, 3)
    assert H % 2 == 0 and W % 2 == 0
    Ho, Wo = H // 2, W // 2
    WP = ((Wo + 31) // 32) * 32        # per-channel lane pitch (padded output width)
    HP = ((Ho + 7) // 8) * 8           # padded output height (sublane alignment)

    Cpad, cg = _channel_tiling(C, WP, min_blocks)
    if Cpad > C:                       # channel-padding fallback (e.g. C=58)
        x = jnp.pad(x, ((0, 0), (0, Cpad - C), (0, 0), (0, 0)))
        w = jnp.pad(w, ((0, Cpad - C), (0, 0), (0, 0), (0, 0)))
    Ct = Cpad
    LB = cg * WP                       # lanes per grid block (multiple of 128)
    L = Ct * WP

    # --- input: 4 spatial parity planes, channels fused into the lane axis ----------
    # xp[n, 2a+b, i, c*WP + j] = x[n, c, 2i+a, 2j+b]; pad rows/lanes are zero.
    xr = x.reshape(N, Ct, Ho, 2, Wo, 2)
    xp = jnp.transpose(xr, (0, 3, 5, 2, 1, 4)).reshape(N, 4, Ho, Ct, Wo)
    xp = jnp.pad(xp, ((0, 0), (0, 0), (0, HP - Ho), (0, 0), (0, WP - Wo)))
    xp = xp.reshape(N, 4, HP, L)

    # --- weights: one per-lane tap vector per (ki, kj); conv zero-pad folded in -----
    w9 = w.reshape(Ct, 9).astype(jnp.float32)             # w9[c, 3*ki + kj]
    wv = jnp.broadcast_to(w9.T[:, :, None], (9, Ct, WP))
    j = jnp.arange(WP)
    kj0 = (jnp.arange(9) % 3 == 0)[:, None, None]          # kj==0 taps read column j-1
    keep = (j < Wo)[None, None, :] & ~(kj0 & (j == 0)[None, None, :])
    wv = jnp.where(keep, wv, 0.0).reshape(9, L)

    kernel = functools.partial(_dwconv_s2_kernel, mask_row0=(HP == Ho))

    flops = 17 * N * C * Ho * Wo                            # 9 mul + 8 add / output
    bytes_accessed = (xp.size * xp.dtype.itemsize
                      + wv.size * wv.dtype.itemsize
                      + N * HP * L * x.dtype.itemsize)

    yo = pl.pallas_call(
        kernel,
        out_shape=jax.ShapeDtypeStruct((N, HP, L), x.dtype),
        grid=(N, Ct // cg),
        in_specs=[
            pl.BlockSpec((1, 4, HP, LB), lambda n, cb: (n, 0, 0, cb)),
            pl.BlockSpec((9, LB), lambda n, cb: (0, cb)),
        ],
        out_specs=pl.BlockSpec((1, HP, LB), lambda n, cb: (n, 0, cb)),
        compiler_params=pltpu.CompilerParams(
            dimension_semantics=("parallel", "parallel")),
        cost_estimate=pl.CostEstimate(
            flops=flops, transcendentals=0, bytes_accessed=bytes_accessed),
    )(xp, wv)

    # --- back to NCHW ----------------------------------------------------------------
    y = yo.reshape(N, HP, Ct, WP)[:, :Ho, :C, :Wo]
    return jnp.transpose(y, (0, 2, 1, 3))


def depthwise_conv2d_s2(x, w):
    """Conv2d(C, C, kernel=3, stride=2, padding=1, groups=C, bias=False).

    x: (N, C, H, W), w: (C, 1, 3, 3)  ->  (N, C, H//2, W//2)  (PyTorch semantics)
    """
    # Only ask for >=2 channel blocks when a dual-TensorCore chip (v7x) would
    # otherwise idle a core; on v5e/v6e (or N >= 2) a single block avoids the
    # extra per-grid-step overhead and the redundant weight DMA.
    min_blocks = 2 if (x.shape[0] < 2 and _num_tensorcores() >= 2) else 1
    return _dwconv_s2_impl(x, w, min_blocks=min_blocks)


if __name__ == "__main__":
    key = jax.random.PRNGKey(0)
    kx, kw = jax.random.split(key)

    # Shapes from the module: x4 = randn(1, 24, 56, 56); Conv2d(24,24,3,2,1,groups=24)
    N, C, H, W = 1, 24, 56, 56
    x = jax.random.normal(kx, (N, C, H, W), dtype=jnp.float32)
    w = jax.random.normal(kw, (C, 1, 3, 3), dtype=jnp.float32) * 0.1

    y = jax.block_until_ready(depthwise_conv2d_s2(x, w))

    # Reference: XLA grouped conv with the same semantics as torch.nn.Conv2d.
    y_ref = jax.lax.conv_general_dilated(
        x, w, window_strides=(2, 2), padding=((1, 1), (1, 1)),
        dimension_numbers=("NCHW", "OIHW", "NCHW"), feature_group_count=C,
        precision=jax.lax.Precision.HIGHEST)

    assert y.shape == (N, C, H // 2, W // 2), y.shape
    assert jnp.allclose(y, y_ref, atol=1e-5, rtol=1e-5), \
        float(jnp.max(jnp.abs(y - y_ref)))

    print("KERNEL_OK")
</pallas_src>

<mosaic_0001>
module attributes {stable_mosaic.version = 11 : i64} {
  func.func @_dwconv_s2_kernel(%arg0: i32, %arg1: i32, %arg2: memref<1x4x32x768xf32, #tpu.memory_space<vmem>>, %arg3: memref<9x768xf32, #tpu.memory_space<vmem>>, %arg4: memref<1x32x768xf32, #tpu.memory_space<vmem>>) attributes {dimension_semantics = [#tpu.dimension_semantics<parallel>, #tpu.dimension_semantics<parallel>], iteration_bounds = array<i64: 1, 1>, scalar_prefetch = 0 : i64, scratch_operands = 0 : i64, tpu.core_type = #tpu.core_type<tc>, window_params = [{transform_indices = @transform_0, window_bounds = array<i64: 1, 4, 32, 768>}, {transform_indices = @transform_1, window_bounds = array<i64: 9, 768>}, {transform_indices = @transform_2, window_bounds = array<i64: 1, 32, 768>}]} {
    %c0 = arith.constant 0 : index
    %c0_0 = arith.constant 0 : index
    %c0_1 = arith.constant 0 : index
    %c0_2 = arith.constant 0 : index
    %0 = vector.load %arg2[%c0, %c0_0, %c0_1, %c0_2] : memref<1x4x32x768xf32, #tpu.memory_space<vmem>>, vector<1x1x32x768xf32>
    %1 = vector.shape_cast %0 : vector<1x1x32x768xf32> to vector<32x768xf32>
    %c0_3 = arith.constant 0 : index
    %c1 = arith.constant 1 : index
    %c0_4 = arith.constant 0 : index
    %c0_5 = arith.constant 0 : index
    %2 = vector.load %arg2[%c0_3, %c1, %c0_4, %c0_5] : memref<1x4x32x768xf32, #tpu.memory_space<vmem>>, vector<1x1x32x768xf32>
    %3 = vector.shape_cast %2 : vector<1x1x32x768xf32> to vector<32x768xf32>
    %c0_6 = arith.constant 0 : index
    %c2 = arith.constant 2 : index
    %c0_7 = arith.constant 0 : index
    %c0_8 = arith.constant 0 : index
    %4 = vector.load %arg2[%c0_6, %c2, %c0_7, %c0_8] : memref<1x4x32x768xf32, #tpu.memory_space<vmem>>, vector<1x1x32x768xf32>
    %5 = vector.shape_cast %4 : vector<1x1x32x768xf32> to vector<32x768xf32>
    %c0_9 = arith.constant 0 : index
    %c3 = arith.constant 3 : index
    %c0_10 = arith.constant 0 : index
    %c0_11 = arith.constant 0 : index
    %6 = vector.load %arg2[%c0_9, %c3, %c0_10, %c0_11] : memref<1x4x32x768xf32, #tpu.memory_space<vmem>>, vector<1x1x32x768xf32>
    %7 = vector.shape_cast %6 : vector<1x1x32x768xf32> to vector<32x768xf32>
    %c1_i32 = arith.constant 1 : i32
    %8 = tpu.dynamic_rotate %7 by %c1_i32 dim 1 : vector<32x768xf32>, i32 -> vector<32x768xf32>
    %c1_12 = arith.constant 1 : index
    %c0_13 = arith.constant 0 : index
    %9 = vector.load %arg3[%c1_12, %c0_13] : memref<9x768xf32, #tpu.memory_space<vmem>>, vector<1x768xf32>
    %10 = vector.broadcast %9 : vector<1x768xf32> to vector<32x768xf32>
    %11 = arith.mulf %5, %10 : vector<32x768xf32>
    %c2_14 = arith.constant 2 : index
    %c0_15 = arith.constant 0 : index
    %12 = vector.load %arg3[%c2_14, %c0_15] : memref<9x768xf32, #tpu.memory_space<vmem>>, vector<1x768xf32>
    %13 = vector.broadcast %12 : vector<1x768xf32> to vector<32x768xf32>
    %14 = arith.mulf %7, %13 : vector<32x768xf32>
    %15 = arith.addf %11, %14 : vector<32x768xf32>
    %c0_16 = arith.constant 0 : index
    %c0_17 = arith.constant 0 : index
    %16 = vector.load %arg3[%c0_16, %c0_17] : memref<9x768xf32, #tpu.memory_space<vmem>>, vector<1x768xf32>
    %17 = vector.broadcast %16 : vector<1x768xf32> to vector<32x768xf32>
    %18 = arith.mulf %8, %17 : vector<32x768xf32>
    %19 = arith.addf %15, %18 : vector<32x768xf32>
    %c1_i32_18 = arith.constant 1 : i32
    %20 = tpu.dynamic_rotate %19 by %c1_i32_18 dim 0 : vector<32x768xf32>, i32 -> vector<32x768xf32>
    %c4 = arith.constant 4 : index
    %c0_19 = arith.constant 0 : index
    %21 = vector.load %arg3[%c4, %c0_19] : memref<9x768xf32, #tpu.memory_space<vmem>>, vector<1x768xf32>
    %22 = vector.broadcast %21 : vector<1x768xf32> to vector<32x768xf32>
    %23 = arith.mulf %1, %22 : vector<32x768xf32>
    %24 = arith.addf %20, %23 : vector<32x768xf32>
    %c5 = arith.constant 5 : index
    %c0_20 = arith.constant 0 : index
    %25 = vector.load %arg3[%c5, %c0_20] : memref<9x768xf32, #tpu.memory_space<vmem>>, vector<1x768xf32>
    %26 = vector.broadcast %25 : vector<1x768xf32> to vector<32x768xf32>
    %27 = arith.mulf %3, %26 : vector<32x768xf32>
    %28 = arith.addf %24, %27 : vector<32x768xf32>
    %c1_i32_21 = arith.constant 1 : i32
    %29 = tpu.dynamic_rotate %3 by %c1_i32_21 dim 1 : vector<32x768xf32>, i32 -> vector<32x768xf32>
    %c3_22 = arith.constant 3 : index
    %c0_23 = arith.constant 0 : index
    %30 = vector.load %arg3[%c3_22, %c0_23] : memref<9x768xf32, #tpu.memory_space<vmem>>, vector<1x768xf32>
    %31 = vector.broadcast %30 : vector<1x768xf32> to vector<32x768xf32>
    %32 = arith.mulf %29, %31 : vector<32x768xf32>
    %33 = arith.addf %28, %32 : vector<32x768xf32>
    %c7 = arith.constant 7 : index
    %c0_24 = arith.constant 0 : index
    %34 = vector.load %arg3[%c7, %c0_24] : memref<9x768xf32, #tpu.memory_space<vmem>>, vector<1x768xf32>
    %35 = vector.broadcast %34 : vector<1x768xf32> to vector<32x768xf32>
    %36 = arith.mulf %5, %35 : vector<32x768xf32>
    %37 = arith.addf %33, %36 : vector<32x768xf32>
    %c8 = arith.constant 8 : index
    %c0_25 = arith.constant 0 : index
    %38 = vector.load %arg3[%c8, %c0_25] : memref<9x768xf32, #tpu.memory_space<vmem>>, vector<1x768xf32>
    %39 = vector.broadcast %38 : vector<1x768xf32> to vector<32x768xf32>
    %40 = arith.mulf %7, %39 : vector<32x768xf32>
    %41 = arith.addf %37, %40 : vector<32x768xf32>
    %c6 = arith.constant 6 : index
    %c0_26 = arith.constant 0 : index
    %42 = vector.load %arg3[%c6, %c0_26] : memref<9x768xf32, #tpu.memory_space<vmem>>, vector<1x768xf32>
    %43 = vector.broadcast %42 : vector<1x768xf32> to vector<32x768xf32>
    %44 = arith.mulf %8, %43 : vector<32x768xf32>
    %45 = arith.addf %41, %44 : vector<32x768xf32>
    %c0_27 = arith.constant 0 : index
    %c0_28 = arith.constant 0 : index
    %c0_29 = arith.constant 0 : index
    %46 = vector.load %arg4[%c0_27, %c0_28, %c0_29] : memref<1x32x768xf32, #tpu.memory_space<vmem>>, vector<1x32x768xf32>
    %47 = vector.shape_cast %46 : vector<1x32x768xf32> to vector<32x768xf32>
    %48 = vector.shape_cast %45 : vector<32x768xf32> to vector<1x32x768xf32>
    tpu.vector_store %arg4[%c0_27, %c0_28, %c0_29], %48 {strides = array<i32>} : memref<1x32x768xf32, #tpu.memory_space<vmem>>, vector<1x32x768xf32>,
    return
  }
  func.func @transform_0(%arg0: i32, %arg1: i32) -> (i32, i32, i32, i32) {
    %c0_i32 = arith.constant 0 : i32
    %c0_i32_0 = arith.constant 0 : i32
    %c0_i32_1 = arith.constant 0 : i32
    return %arg0, %c0_i32, %c0_i32_0, %arg1 : i32, i32, i32, i32
  }
  func.func @transform_1(%arg0: i32, %arg1: i32) -> (i32, i32) {
    %c0_i32 = arith.constant 0 : i32
    %c0_i32_0 = arith.constant 0 : i32
    return %c0_i32, %arg1 : i32, i32
  }
  func.func @transform_2(%arg0: i32, %arg1: i32) -> (i32, i32, i32) {
    %c0_i32 = arith.constant 0 : i32
    %c0_i32_0 = arith.constant 0 : i32
    return %arg0, %c0_i32, %arg1 : i32, i32, i32
  }
}

</mosaic_0001>

<llo_original>
// kernel: _dwconv_s2_impl.1
$region0: #{_dwconv_s2_impl.1}
  #allocation0 [shape = 'u32[]', space=smem, size = 0x4, offset = 0x4, fixed_abs, tag = 'smem constant byte address 0x4 - core index']
  #allocation1 [shape = 'u32[144,128]{1,0:T(1,128)}', space=vmem, size = 0x12000, scoped, tag = 'internal scratch']
  %s0 = inlined_call_operand.vmem [shape: f32[1,4,32,768], index: 0, kind: input, shape index: {}]
  %s1 = inlined_call_operand.vmem [shape: f32[9,768], index: 1, kind: input, shape index: {}]
  %s2 = inlined_call_operand.vmem [shape: f32[1,32,768], index: 2, kind: output, shape index: {}]
  %s3 = sld [smem:[#allocation0]]
  $region18: #{_dwconv_s2_impl.1} parent=0
    _
  %s5 = ssub.s32 1, %s3
  %s6 = scalar_select 0, %s5, %s3
  // Predicated region
  $region2: #{_dwconv_s2_impl.1} parent=0 // pred_check
    _
  $region3: #{_dwconv_s2_impl.1} parent=0 // pred_check_branch
    %8 = sbr.rel (0) target = $region5
  $region4: #{_dwconv_s2_impl.1} parent=0 // pred_region
    _
  $region5: #{_dwconv_s2_impl.1} parent=0 // pred_fallthru
    _
  // Predicated region
  $region6: #{_dwconv_s2_impl.1} parent=0 // pred_check
    _
  $region7: #{_dwconv_s2_impl.1} parent=0 // pred_check_branch
    %10 = sbr.rel (0) target = $region9
  $region8: #{_dwconv_s2_impl.1} parent=0 // pred_region
    _
  $region9: #{_dwconv_s2_impl.1} parent=0 // pred_fallthru
    _
  %v11 = vld [vmem:[%s0] sm:$0xff]
  %v12 = vld [vmem:[%s0 + $0x8] sm:$0xff]
  %v13 = vld [vmem:[%s0 + $0x10] sm:$0xff]
  %v14 = vld [vmem:[%s0 + $0x18] sm:$0xff]
  %v15 = vld [vmem:[%s0 + $0x20] sm:$0xff]
  %v16 = vld [vmem:[%s0 + $0x28] sm:$0xff]
  %v17 = vld [vmem:[%s0 + $0x30] sm:$0xff]
  %v18 = vld [vmem:[%s0 + $0x38] sm:$0xff]
  %v19 = vld [vmem:[%s0 + $0x40] sm:$0xff]
  %v20 = vld [vmem:[%s0 + $0x48] sm:$0xff]
  %v21 = vld [vmem:[%s0 + $0x50] sm:$0xff]
  %v22 = vld [vmem:[%s0 + $0x58] sm:$0xff]
  %v23 = vld [vmem:[%s0 + $0x60] sm:$0xff]
  %v24 = vld [vmem:[%s0 + $0x68] sm:$0xff]
  %v25 = vld [vmem:[%s0 + $0x70] sm:$0xff]
  %v26 = vld [vmem:[%s0 + $0x78] sm:$0xff]
  %v27 = vld [vmem:[%s0 + $0x80] sm:$0xff]
  %v28 = vld [vmem:[%s0 + $0x88] sm:$0xff]
  %v29 = vld [vmem:[%s0 + $0x90] sm:$0xff]
  %v30 = vld [vmem:[%s0 + $0x98] sm:$0xff]
  %v31 = vld [vmem:[%s0 + $0xa0] sm:$0xff]
  %v32 = vld [vmem:[%s0 + $0xa8] sm:$0xff]
  %v33 = vld [vmem:[%s0 + $0xb0] sm:$0xff]
  %v34 = vld [vmem:[%s0 + $0xb8] sm:$0xff]
  %s35 = scalar_lea.vmem %s0, 192
  %v36 = vld [vmem:[%s35] sm:$0xff]
  %v37 = vld [vmem:[%s35 + $0x8] sm:$0xff]
  %v38 = vld [vmem:[%s35 + $0x10] sm:$0xff]
  %v39 = vld [vmem:[%s35 + $0x18] sm:$0xff]
  %v40 = vld [vmem:[%s35 + $0x20] sm:$0xff]
  %v41 = vld [vmem:[%s35 + $0x28] sm:$0xff]
  %v42 = vld [vmem:[%s35 + $0x30] sm:$0xff]
  %v43 = vld [vmem:[%s35 + $0x38] sm:$0xff]
  %v44 = vld [vmem:[%s35 + $0x40] sm:$0xff]
  %v45 = vld [vmem:[%s35 + $0x48] sm:$0xff]
  %v46 = vld [vmem:[%s35 + $0x50] sm:$0xff]
  %v47 = vld [vmem:[%s35 + $0x58] sm:$0xff]
  %v48 = vld [vmem:[%s35 + $0x60] sm:$0xff]
  %v49 = vld [vmem:[%s35 + $0x68] sm:$0xff]
  %v50 = vld [vmem:[%s35 + $0x70] sm:$0xff]
  %v51 = vld [vmem:[%s35 + $0x78] sm:$0xff]
  %v52 = vld [vmem:[%s35 + $0x80] sm:$0xff]
  %v53 = vld [vmem:[%s35 + $0x88] sm:$0xff]
  %v54 = vld [vmem:[%s35 + $0x90] sm:$0xff]
  %v55 = vld [vmem:[%s35 + $0x98] sm:$0xff]
  %v56 = vld [vmem:[%s35 + $0xa0] sm:$0xff]
  %v57 = vld [vmem:[%s35 + $0xa8] sm:$0xff]
  %v58 = vld [vmem:[%s35 + $0xb0] sm:$0xff]
  %v59 = vld [vmem:[%s35 + $0xb8] sm:$0xff]
  %s60 = scalar_lea.vmem %s0, 384
  %v61 = vld [vmem:[%s60] sm:$0xff]
  %v62 = vld [vmem:[%s60 + $0x8] sm:$0xff]
  %v63 = vld [vmem:[%s60 + $0x10] sm:$0xff]
  %v64 = vld [vmem:[%s60 + $0x18] sm:$0xff]
  %v65 = vld [vmem:[%s60 + $0x20] sm:$0xff]
  %v66 = vld [vmem:[%s60 + $0x28] sm:$0xff]
  %v67 = vld [vmem:[%s60 + $0x30] sm:$0xff]
  %v68 = vld [vmem:[%s60 + $0x38] sm:$0xff]
  %v69 = vld [vmem:[%s60 + $0x40] sm:$0xff]
  %v70 = vld [vmem:[%s60 + $0x48] sm:$0xff]
  %v71 = vld [vmem:[%s60 + $0x50] sm:$0xff]
  %v72 = vld [vmem:[%s60 + $0x58] sm:$0xff]
  %v73 = vld [vmem:[%s60 + $0x60] sm:$0xff]
  %v74 = vld [vmem:[%s60 + $0x68] sm:$0xff]
  %v75 = vld [vmem:[%s60 + $0x70] sm:$0xff]
  %v76 = vld [vmem:[%s60 + $0x78] sm:$0xff]
  %v77 = vld [vmem:[%s60 + $0x80] sm:$0xff]
  %v78 = vld [vmem:[%s60 + $0x88] sm:$0xff]
  %v79 = vld [vmem:[%s60 + $0x90] sm:$0xff]
  %v80 = vld [vmem:[%s60 + $0x98] sm:$0xff]
  %v81 = vld [vmem:[%s60 + $0xa0] sm:$0xff]
  %v82 = vld [vmem:[%s60 + $0xa8] sm:$0xff]
  %v83 = vld [vmem:[%s60 + $0xb0] sm:$0xff]
  %v84 = vld [vmem:[%s60 + $0xb8] sm:$0xff]
  %s85 = scalar_lea.vmem %s0, 576
  %v86 = vld [vmem:[%s85] sm:$0xff]
  %v87 = vld [vmem:[%s85 + $0x8] sm:$0xff]
  %v88 = vld [vmem:[%s85 + $0x10] sm:$0xff]
  %v89 = vld [vmem:[%s85 + $0x18] sm:$0xff]
  %v90 = vld [vmem:[%s85 + $0x20] sm:$0xff]
  %v91 = vld [vmem:[%s85 + $0x28] sm:$0xff]
  %v92 = vld [vmem:[%s85 + $0x30] sm:$0xff]
  %v93 = vld [vmem:[%s85 + $0x38] sm:$0xff]
  %v94 = vld [vmem:[%s85 + $0x40] sm:$0xff]
  %v95 = vld [vmem:[%s85 + $0x48] sm:$0xff]
  %v96 = vld [vmem:[%s85 + $0x50] sm:$0xff]
  %v97 = vld [vmem:[%s85 + $0x58] sm:$0xff]
  %v98 = vld [vmem:[%s85 + $0x60] sm:$0xff]
  %v99 = vld [vmem:[%s85 + $0x68] sm:$0xff]
  %v100 = vld [vmem:[%s85 + $0x70] sm:$0xff]
  %v101 = vld [vmem:[%s85 + $0x78] sm:$0xff]
  %v102 = vld [vmem:[%s85 + $0x80] sm:$0xff]
  %v103 = vld [vmem:[%s85 + $0x88] sm:$0xff]
  %v104 = vld [vmem:[%s85 + $0x90] sm:$0xff]
  %v105 = vld [vmem:[%s85 + $0x98] sm:$0xff]
  %v106 = vld [vmem:[%s85 + $0xa0] sm:$0xff]
  %v107 = vld [vmem:[%s85 + $0xa8] sm:$0xff]
  %v108 = vld [vmem:[%s85 + $0xb0] sm:$0xff]
  %v109 = vld [vmem:[%s85 + $0xb8] sm:$0xff]
  %110 = vrot.lane.b32.xlu0 %v86, 1
  %v111 = vpop.permute.xlu0 %110
  %112 = vrot.lane.b32.xlu0 %v92, 1
  %v113 = vpop.permute.xlu0 %112
  %114 = vrot.lane.b32.xlu0 %v98, 1
  %v115 = vpop.permute.xlu0 %114
  %116 = vrot.lane.b32.xlu0 %v104, 1
  %v117 = vpop.permute.xlu0 %116
  %118 = vrot.lane.b32.xlu0 %v87, 1
  %v119 = vpop.permute.xlu0 %118
  %120 = vrot.lane.b32.xlu0 %v93, 1
  %v121 = vpop.permute.xlu0 %120
  %122 = vrot.lane.b32.xlu0 %v99, 1
  %v123 = vpop.permute.xlu0 %122
  %124 = vrot.lane.b32.xlu0 %v105, 1
  %v125 = vpop.permute.xlu0 %124
  %126 = vrot.lane.b32.xlu0 %v88, 1
  %v127 = vpop.permute.xlu0 %126
  %128 = vrot.lane.b32.xlu0 %v94, 1
  %v129 = vpop.permute.xlu0 %128
  %130 = vrot.lane.b32.xlu0 %v100, 1
  %v131 = vpop.permute.xlu0 %130
  %132 = vrot.lane.b32.xlu0 %v106, 1
  %v133 = vpop.permute.xlu0 %132
  %134 = vrot.lane.b32.xlu0 %v89, 1
  %v135 = vpop.permute.xlu0 %134
  %136 = vrot.lane.b32.xlu0 %v95, 1
  %v137 = vpop.permute.xlu0 %136
  %138 = vrot.lane.b32.xlu0 %v101, 1
  %v139 = vpop.permute.xlu0 %138
  %140 = vrot.lane.b32.xlu0 %v107, 1
  %v141 = vpop.permute.xlu0 %140
  %142 = vrot.lane.b32.xlu0 %v90, 1
  %v143 = vpop.permute.xlu0 %142
  %144 = vrot.lane.b32.xlu0 %v96, 1
  %v145 = vpop.permute.xlu0 %144
  %146 = vrot.lane.b32.xlu0 %v102, 1
  %v147 = vpop.permute.xlu0 %146
  %148 = vrot.lane.b32.xlu0 %v108, 1
  %v149 = vpop.permute.xlu0 %148
  %150 = vrot.lane.b32.xlu0 %v91, 1
  %v151 = vpop.permute.xlu0 %150
  %152 = vrot.lane.b32.xlu0 %v97, 1
  %v153 = vpop.permute.xlu0 %152
  %154 = vrot.lane.b32.xlu0 %v103, 1
  %v155 = vpop.permute.xlu0 %154
  %156 = vrot.lane.b32.xlu0 %v109, 1
  %v157 = vpop.permute.xlu0 %156
  %v158 = vlaneseq
  %v159 = vand.u32 %v158, 127
  %vm160 = vcmp.lt.s32.totalorder %v159, 1
  %v161 = vsel %vm160, %v143, %v151
  %v162 = vsel %vm160, %v145, %v153
  %v163 = vsel %vm160, %v147, %v155
  %v164 = vsel %vm160, %v149, %v157
  %v165 = vsel %vm160, %v135, %v143
  %v166 = vsel %vm160, %v137, %v145
  %v167 = vsel %vm160, %v139, %v147
  %v168 = vsel %vm160, %v141, %v149
  %v169 = vsel %vm160, %v127, %v135
  %v170 = vsel %vm160, %v129, %v137
  %v171 = vsel %vm160, %v131, %v139
  %v172 = vsel %vm160, %v133, %v141
  %v173 = vsel %vm160, %v119, %v127
  %v174 = vsel %vm160, %v121, %v129
  %v175 = vsel %vm160, %v123, %v131
  %v176 = vsel %vm160, %v125, %v133
  %v177 = vsel %vm160, %v111, %v119
  %v178 = vsel %vm160, %v113, %v121
  %v179 = vsel %vm160, %v115, %v123
  %v180 = vsel %vm160, %v117, %v125
  %v181 = vsel %vm160, %v151, %v111
  %v182 = vsel %vm160, %v153, %v113
  %v183 = vsel %vm160, %v155, %v115
  %v184 = vsel %vm160, %v157, %v117
  %s185 = scalar_lea.vmem %s1, 1
  %v186 = vld [vmem:[%s185] ss:$8 sm:$0xf]
  %v187 = vld [vmem:[%s185] ss:$8 sm:$0x30]
  %v188 = vor.u32 %v186, %v187
  %v190 = vlaneseq
  %v191 = vshrl.u32 %v190, 7
  %v192 = vsub.s32 0, %v191
  %v193 = vrot.slane %v188, %v192
  %v194 = vlaneseq
  %v195 = vshrl.u32 %v194, 7
  %v196 = vsub.s32 1, %v195
  %v197 = vrot.slane %v188, %v196
  %v198 = vlaneseq
  %v199 = vshrl.u32 %v198, 7
  %v200 = vsub.s32 2, %v199
  %v201 = vrot.slane %v188, %v200
  %v202 = vlaneseq
  %v203 = vshrl.u32 %v202, 7
  %v204 = vsub.s32 3, %v203
  %v205 = vrot.slane %v188, %v204
  %v206 = vlaneseq
  %v207 = vshrl.u32 %v206, 7
  %v208 = vsub.s32 4, %v207
  %v209 = vrot.slane %v188, %v208
  %v210 = vlaneseq
  %v211 = vshrl.u32 %v210, 7
  %v212 = vsub.s32 5, %v211
  %v213 = vrot.slane %v188, %v212
  %v220 = vmul.f32 %v61, %v193
  %v221 = vmul.f32 %v62, %v197
  %v222 = vmul.f32 %v63, %v201
  %v223 = vmul.f32 %v64, %v205
  %v224 = vmul.f32 %v65, %v209
  %v225 = vmul.f32 %v66, %v213
  %v226 = vmul.f32 %v67, %v193
  %v227 = vmul.f32 %v68, %v197
  %v228 = vmul.f32 %v69, %v201
  %v229 = vmul.f32 %v70, %v205
  %v230 = vmul.f32 %v71, %v209
  %v231 = vmul.f32 %v72, %v213
  %v232 = vmul.f32 %v73, %v193
  %v233 = vmul.f32 %v74, %v197
  %v234 = vmul.f32 %v75, %v201
  %v235 = vmul.f32 %v76, %v205
  %v236 = vmul.f32 %v77, %v209
  %v237 = vmul.f32 %v78, %v213
  %v238 = vmul.f32 %v79, %v193
  %v239 = vmul.f32 %v80, %v197
  %v240 = vmul.f32 %v81, %v201
  %v241 = vmul.f32 %v82, %v205
  %v242 = vmul.f32 %v83, %v209
  %v243 = vmul.f32 %v84, %v213
  %s244 = scalar_lea.vmem %s1, 2
  %v245 = vld [vmem:[%s244] ss:$8 sm:$0xf]
  %v246 = vld [vmem:[%s244] ss:$8 sm:$0x30]
  %v247 = vor.u32 %v245, %v246
  %v249 = vlaneseq
  %v250 = vshrl.u32 %v249, 7
  %v251 = vsub.s32 0, %v250
  %v252 = vrot.slane %v247, %v251
  %v253 = vlaneseq
  %v254 = vshrl.u32 %v253, 7
  %v255 = vsub.s32 1, %v254
  %v256 = vrot.slane %v247, %v255
  %v257 = vlaneseq
  %v258 = vshrl.u32 %v257, 7
  %v259 = vsub.s32 2, %v258
  %v260 = vrot.slane %v247, %v259
  %v261 = vlaneseq
  %v262 = vshrl.u32 %v261, 7
  %v263 = vsub.s32 3, %v262
  %v264 = vrot.slane %v247, %v263
  %v265 = vlaneseq
  %v266 = vshrl.u32 %v265, 7
  %v267 = vsub.s32 4, %v266
  %v268 = vrot.slane %v247, %v267
  %v269 = vlaneseq
  %v270 = vshrl.u32 %v269, 7
  %v271 = vsub.s32 5, %v270
  %v272 = vrot.slane %v247, %v271
  %v279 = vmul.f32 %v86, %v252
  %v280 = vmul.f32 %v87, %v256
  %v281 = vmul.f32 %v88, %v260
  %v282 = vmul.f32 %v89, %v264
  %v283 = vmul.f32 %v90, %v268
  %v284 = vmul.f32 %v91, %v272
  %v285 = vmul.f32 %v92, %v252
  %v286 = vmul.f32 %v93, %v256
  %v287 = vmul.f32 %v94, %v260
  %v288 = vmul.f32 %v95, %v264
  %v289 = vmul.f32 %v96, %v268
  %v290 = vmul.f32 %v97, %v272
  %v291 = vmul.f32 %v98, %v252
  %v292 = vmul.f32 %v99, %v256
  %v293 = vmul.f32 %v100, %v260
  %v294 = vmul.f32 %v101, %v264
  %v295 = vmul.f32 %v102, %v268
  %v296 = vmul.f32 %v103, %v272
  %v297 = vmul.f32 %v104, %v252
  %v298 = vmul.f32 %v105, %v256
  %v299 = vmul.f32 %v106, %v260
  %v300 = vmul.f32 %v107, %v264
  %v301 = vmul.f32 %v108, %v268
  %v302 = vmul.f32 %v109, %v272
  %v303 = vadd.f32 %v220, %v279
  %v304 = vadd.f32 %v221, %v280
  %v305 = vadd.f32 %v222, %v281
  %v306 = vadd.f32 %v223, %v282
  %v307 = vadd.f32 %v224, %v283
  %v308 = vadd.f32 %v225, %v284
  %v309 = vadd.f32 %v226, %v285
  %v310 = vadd.f32 %v227, %v286
  %v311 = vadd.f32 %v228, %v287
  %v312 = vadd.f32 %v229, %v288
  %v313 = vadd.f32 %v230, %v289
  %v314 = vadd.f32 %v231, %v290
  %v315 = vadd.f32 %v232, %v291
  %v316 = vadd.f32 %v233, %v292
  %v317 = vadd.f32 %v234, %v293
  %v318 = vadd.f32 %v235, %v294
  %v319 = vadd.f32 %v236, %v295
  %v320 = vadd.f32 %v237, %v296
  %v321 = vadd.f32 %v238, %v297
  %v322 = vadd.f32 %v239, %v298
  %v323 = vadd.f32 %v240, %v299
  %v324 = vadd.f32 %v241, %v300
  %v325 = vadd.f32 %v242, %v301
  %v326 = vadd.f32 %v243, %v302
  %v327 = vld [vmem:[%s1] ss:$8 sm:$0xf]
  %v328 = vld [vmem:[%s1] ss:$8 sm:$0x30]
  %v329 = vor.u32 %v327, %v328
  %v331 = vlaneseq
  %v332 = vshrl.u32 %v331, 7
  %v333 = vsub.s32 0, %v332
  %v334 = vrot.slane %v329, %v333
  %v335 = vlaneseq
  %v336 = vshrl.u32 %v335, 7
  %v337 = vsub.s32 1, %v336
  %v338 = vrot.slane %v329, %v337
  %v339 = vlaneseq
  %v340 = vshrl.u32 %v339, 7
  %v341 = vsub.s32 2, %v340
  %v342 = vrot.slane %v329, %v341
  %v343 = vlaneseq
  %v344 = vshrl.u32 %v343, 7
  %v345 = vsub.s32 3, %v344
  %v346 = vrot.slane %v329, %v345
  %v347 = vlaneseq
  %v348 = vshrl.u32 %v347, 7
  %v349 = vsub.s32 4, %v348
  %v350 = vrot.slane %v329, %v349
  %v351 = vlaneseq
  %v352 = vshrl.u32 %v351, 7
  %v353 = vsub.s32 5, %v352
  %v354 = vrot.slane %v329, %v353
  %v361 = vmul.f32 %v181, %v334
  %v362 = vmul.f32 %v177, %v338
  %v363 = vmul.f32 %v173, %v342
  %v364 = vmul.f32 %v169, %v346
  %v365 = vmul.f32 %v165, %v350
  %v366 = vmul.f32 %v161, %v354
  %v367 = vmul.f32 %v182, %v334
  %v368 = vmul.f32 %v178, %v338
  %v369 = vmul.f32 %v174, %v342
  %v370 = vmul.f32 %v170, %v346
  %v371 = vmul.f32 %v166, %v350
  %v372 = vmul.f32 %v162, %v354
  %v373 = vmul.f32 %v183, %v334
  %v374 = vmul.f32 %v179, %v338
  %v375 = vmul.f32 %v175, %v342
  %v376 = vmul.f32 %v171, %v346
  %v377 = vmul.f32 %v167, %v350
  %v378 = vmul.f32 %v163, %v354
  %v379 = vmul.f32 %v184, %v334
  %v380 = vmul.f32 %v180, %v338
  %v381 = vmul.f32 %v176, %v342
  %v382 = vmul.f32 %v172, %v346
  %v383 = vmul.f32 %v168, %v350
  %v384 = vmul.f32 %v164, %v354
  %v385 = vadd.f32 %v303, %v361
  %v386 = vadd.f32 %v304, %v362
  %v387 = vadd.f32 %v305, %v363
  %v388 = vadd.f32 %v306, %v364
  %v389 = vadd.f32 %v307, %v365
  %v390 = vadd.f32 %v308, %v366
  %v391 = vadd.f32 %v309, %v367
  %v392 = vadd.f32 %v310, %v368
  %v393 = vadd.f32 %v311, %v369
  %v394 = vadd.f32 %v312, %v370
  %v395 = vadd.f32 %v313, %v371
  %v396 = vadd.f32 %v314, %v372
  %v397 = vadd.f32 %v315, %v373
  %v398 = vadd.f32 %v316, %v374
  %v399 = vadd.f32 %v317, %v375
  %v400 = vadd.f32 %v318, %v376
  %v401 = vadd.f32 %v319, %v377
  %v402 = vadd.f32 %v320, %v378
  %v403 = vadd.f32 %v321, %v379
  %v404 = vadd.f32 %v322, %v380
  %v405 = vadd.f32 %v323, %v381
  %v406 = vadd.f32 %v324, %v382
  %v407 = vadd.f32 %v325, %v383
  %v408 = vadd.f32 %v326, %v384
  %v409 = vrot.slane %v385, 7
  %v410 = vrot.slane %v386, 7
  %v411 = vrot.slane %v387, 7
  %v412 = vrot.slane %v388, 7
  %v413 = vrot.slane %v389, 7
  %v414 = vrot.slane %v390, 7
  %v415 = vrot.slane %v391, 7
  %v416 = vrot.slane %v392, 7
  %v417 = vrot.slane %v393, 7
  %v418 = vrot.slane %v394, 7
  %v419 = vrot.slane %v395, 7
  %v420 = vrot.slane %v396, 7
  %v421 = vrot.slane %v397, 7
  %v422 = vrot.slane %v398, 7
  %v423 = vrot.slane %v399, 7
  %v424 = vrot.slane %v400, 7
  %v425 = vrot.slane %v401, 7
  %v426 = vrot.slane %v402, 7
  %v427 = vrot.slane %v403, 7
  %v428 = vrot.slane %v404, 7
  %v429 = vrot.slane %v405, 7
  %v430 = vrot.slane %v406, 7
  %v431 = vrot.slane %v407, 7
  %v432 = vrot.slane %v408, 7
  %v433 = vlaneseq
  %v434 = vshrl.u32 %v433, 7
  %vm435 = vcmp.lt.s32.totalorder %v434, 1
  %v436 = vsel %vm435, %v421, %v427
  %v437 = vsel %vm435, %v422, %v428
  %v438 = vsel %vm435, %v423, %v429
  %v439 = vsel %vm435, %v424, %v430
  %v440 = vsel %vm435, %v425, %v431
  %v441 = vsel %vm435, %v426, %v432
  %v442 = vsel %vm435, %v415, %v421
  %v443 = vsel %vm435, %v416, %v422
  %v444 = vsel %vm435, %v417, %v423
  %v445 = vsel %vm435, %v418, %v424
  %v446 = vsel %vm435, %v419, %v425
  %v447 = vsel %vm435, %v420, %v426
  %v448 = vsel %vm435, %v409, %v415
  %v449 = vsel %vm435, %v410, %v416
  %v450 = vsel %vm435, %v411, %v417
  %v451 = vsel %vm435, %v412, %v418
  %v452 = vsel %vm435, %v413, %v419
  %v453 = vsel %vm435, %v414, %v420
  %v454 = vsel %vm435, %v427, %v409
  %v455 = vsel %vm435, %v428, %v410
  %v456 = vsel %vm435, %v429, %v411
  %v457 = vsel %vm435, %v430, %v412
  %v458 = vsel %vm435, %v431, %v413
  %v459 = vsel %vm435, %v432, %v414
  %s460 = scalar_lea.vmem %s1, 4
  %v461 = vld [vmem:[%s460] ss:$8 sm:$0xf]
  %v462 = vld [vmem:[%s460] ss:$8 sm:$0x30]
  %v463 = vor.u32 %v461, %v462
  %v465 = vlaneseq
  %v466 = vshrl.u32 %v465, 7
  %v467 = vsub.s32 0, %v466
  %v468 = vrot.slane %v463, %v467
  %v469 = vlaneseq
  %v470 = vshrl.u32 %v469, 7
  %v471 = vsub.s32 1, %v470
  %v472 = vrot.slane %v463, %v471
  %v473 = vlaneseq
  %v474 = vshrl.u32 %v473, 7
  %v475 = vsub.s32 2, %v474
  %v476 = vrot.slane %v463, %v475
  %v477 = vlaneseq
  %v478 = vshrl.u32 %v477, 7
  %v479 = vsub.s32 3, %v478
  %v480 = vrot.slane %v463, %v479
  %v481 = vlaneseq
  %v482 = vshrl.u32 %v481, 7
  %v483 = vsub.s32 4, %v482
  %v484 = vrot.slane %v463, %v483
  %v485 = vlaneseq
  %v486 = vshrl.u32 %v485, 7
  %v487 = vsub.s32 5, %v486
  %v488 = vrot.slane %v463, %v487
  %v495 = vmul.f32 %v11, %v468
  %v496 = vmul.f32 %v12, %v472
  %v497 = vmul.f32 %v13, %v476
  %v498 = vmul.f32 %v14, %v480
  %v499 = vmul.f32 %v15, %v484
  %v500 = vmul.f32 %v16, %v488
  %v501 = vmul.f32 %v17, %v468
  %v502 = vmul.f32 %v18, %v472
  %v503 = vmul.f32 %v19, %v476
  %v504 = vmul.f32 %v20, %v480
  %v505 = vmul.f32 %v21, %v484
  %v506 = vmul.f32 %v22, %v488
  %v507 = vmul.f32 %v23, %v468
  %v508 = vmul.f32 %v24, %v472
  %v509 = vmul.f32 %v25, %v476
  %v510 = vmul.f32 %v26, %v480
  %v511 = vmul.f32 %v27, %v484
  %v512 = vmul.f32 %v28, %v488
  %v513 = vmul.f32 %v29, %v468
  %v514 = vmul.f32 %v30, %v472
  %v515 = vmul.f32 %v31, %v476
  %v516 = vmul.f32 %v32, %v480
  %v517 = vmul.f32 %v33, %v484
  %v518 = vmul.f32 %v34, %v488
  %v519 = vadd.f32 %v454, %v495
  %v520 = vadd.f32 %v455, %v496
  %v521 = vadd.f32 %v456, %v497
  %v522 = vadd.f32 %v457, %v498
  %v523 = vadd.f32 %v458, %v499
  %v524 = vadd.f32 %v459, %v500
  %v525 = vadd.f32 %v448, %v501
  %v526 = vadd.f32 %v449, %v502
  %v527 = vadd.f32 %v450, %v503
  %v528 = vadd.f32 %v451, %v504
  %v529 = vadd.f32 %v452, %v505
  %v530 = vadd.f32 %v453, %v506
  %v531 = vadd.f32 %v442, %v507
  %v532 = vadd.f32 %v443, %v508
  %v533 = vadd.f32 %v444, %v509
  %v534 = vadd.f32 %v445, %v510
  %v535 = vadd.f32 %v446, %v511
  %v536 = vadd.f32 %v447, %v512
  %v537 = vadd.f32 %v436, %v513
  %v538 = vadd.f32 %v437, %v514
  %v539 = vadd.f32 %v438, %v515
  %v540 = vadd.f32 %v439, %v516
  %v541 = vadd.f32 %v440, %v517
  %v542 = vadd.f32 %v441, %v518
  %s543 = scalar_lea.vmem %s1, 5
  %v544 = vld [vmem:[%s543] ss:$8 sm:$0xf]
  %v545 = vld [vmem:[%s543] ss:$8 sm:$0x30]
  %v546 = vor.u32 %v544, %v545
  %v548 = vlaneseq
  %v549 = vshrl.u32 %v548, 7
  %v550 = vsub.s32 0, %v549
  %v551 = vrot.slane %v546, %v550
  %v552 = vlaneseq
  %v553 = vshrl.u32 %v552, 7
  %v554 = vsub.s32 1, %v553
  %v555 = vrot.slane %v546, %v554
  %v556 = vlaneseq
  %v557 = vshrl.u32 %v556, 7
  %v558 = vsub.s32 2, %v557
  %v559 = vrot.slane %v546, %v558
  %v560 = vlaneseq
  %v561 = vshrl.u32 %v560, 7
  %v562 = vsub.s32 3, %v561
  %v563 = vrot.slane %v546, %v562
  %v564 = vlaneseq
  %v565 = vshrl.u32 %v564, 7
  %v566 = vsub.s32 4, %v565
  %v567 = vrot.slane %v546, %v566
  %v568 = vlaneseq
  %v569 = vshrl.u32 %v568, 7
  %v570 = vsub.s32 5, %v569
  %v571 = vrot.slane %v546, %v570
  %v578 = vmul.f32 %v36, %v551
  %v579 = vmul.f32 %v37, %v555
  %v580 = vmul.f32 %v38, %v559
  %v581 = vmul.f32 %v39, %v563
  %v582 = vmul.f32 %v40, %v567
  %v583 = vmul.f32 %v41, %v571
  %v584 = vmul.f32 %v42, %v551
  %v585 = vmul.f32 %v43, %v555
  %v586 = vmul.f32 %v44, %v559
  %v587 = vmul.f32 %v45, %v563
  %v588 = vmul.f32 %v46, %v567
  %v589 = vmul.f32 %v47, %v571
  %v590 = vmul.f32 %v48, %v551
  %v591 = vmul.f32 %v49, %v555
  %v592 = vmul.f32 %v50, %v559
  %v593 = vmul.f32 %v51, %v563
  %v594 = vmul.f32 %v52, %v567
  %v595 = vmul.f32 %v53, %v571
  %v596 = vmul.f32 %v54, %v551
  %v597 = vmul.f32 %v55, %v555
  %v598 = vmul.f32 %v56, %v559
  %v599 = vmul.f32 %v57, %v563
  %v600 = vmul.f32 %v58, %v567
  %v601 = vmul.f32 %v59, %v571
  %v602 = vadd.f32 %v519, %v578
  %v603 = vadd.f32 %v520, %v579
  %v604 = vadd.f32 %v521, %v580
  %v605 = vadd.f32 %v522, %v581
  %v606 = vadd.f32 %v523, %v582
  %v607 = vadd.f32 %v524, %v583
  %v608 = vadd.f32 %v525, %v584
  %v609 = vadd.f32 %v526, %v585
  %v610 = vadd.f32 %v527, %v586
  %v611 = vadd.f32 %v528, %v587
  %v612 = vadd.f32 %v529, %v588
  %v613 = vadd.f32 %v530, %v589
  %v614 = vadd.f32 %v531, %v590
  %v615 = vadd.f32 %v532, %v591
  %v616 = vadd.f32 %v533, %v592
  %v617 = vadd.f32 %v534, %v593
  %v618 = vadd.f32 %v535, %v594
  %v619 = vadd.f32 %v536, %v595
  %v620 = vadd.f32 %v537, %v596
  %v621 = vadd.f32 %v538, %v597
  %v622 = vadd.f32 %v539, %v598
  %v623 = vadd.f32 %v540, %v599
  %v624 = vadd.f32 %v541, %v600
  %v625 = vadd.f32 %v542, %v601
  %626 = vrot.lane.b32.xlu0 %v36, 1
  %v627 = vpop.permute.xlu0 %626
  %628 = vrot.lane.b32.xlu0 %v42, 1
  %v629 = vpop.permute.xlu0 %628
  %630 = vrot.lane.b32.xlu0 %v48, 1
  %v631 = vpop.permute.xlu0 %630
  %632 = vrot.lane.b32.xlu0 %v54, 1
  %v633 = vpop.permute.xlu0 %632
  %634 = vrot.lane.b32.xlu0 %v37, 1
  %v635 = vpop.permute.xlu0 %634
  %636 = vrot.lane.b32.xlu0 %v43, 1
  %v637 = vpop.permute.xlu0 %636
  %638 = vrot.lane.b32.xlu0 %v49, 1
  %v639 = vpop.permute.xlu0 %638
  %640 = vrot.lane.b32.xlu0 %v55, 1
  %v641 = vpop.permute.xlu0 %640
  %642 = vrot.lane.b32.xlu0 %v38, 1
  %v643 = vpop.permute.xlu0 %642
  %644 = vrot.lane.b32.xlu0 %v44, 1
  %v645 = vpop.permute.xlu0 %644
  %646 = vrot.lane.b32.xlu0 %v50, 1
  %v647 = vpop.permute.xlu0 %646
  %648 = vrot.lane.b32.xlu0 %v56, 1
  %v649 = vpop.permute.xlu0 %648
  %650 = vrot.lane.b32.xlu0 %v39, 1
  %v651 = vpop.permute.xlu0 %650
  %652 = vrot.lane.b32.xlu0 %v45, 1
  %v653 = vpop.permute.xlu0 %652
  %654 = vrot.lane.b32.xlu0 %v51, 1
  %v655 = vpop.permute.xlu0 %654
  %656 = vrot.lane.b32.xlu0 %v57, 1
  %v657 = vpop.permute.xlu0 %656
  %658 = vrot.lane.b32.xlu0 %v40, 1
  %v659 = vpop.permute.xlu0 %658
  %660 = vrot.lane.b32.xlu0 %v46, 1
  %v661 = vpop.permute.xlu0 %660
  %662 = vrot.lane.b32.xlu0 %v52, 1
  %v663 = vpop.permute.xlu0 %662
  %664 = vrot.lane.b32.xlu0 %v58, 1
  %v665 = vpop.permute.xlu0 %664
  %666 = vrot.lane.b32.xlu0 %v41, 1
  %v667 = vpop.permute.xlu0 %666
  %668 = vrot.lane.b32.xlu0 %v47, 1
  %v669 = vpop.permute.xlu0 %668
  %670 = vrot.lane.b32.xlu0 %v53, 1
  %v671 = vpop.permute.xlu0 %670
  %672 = vrot.lane.b32.xlu0 %v59, 1
  %v673 = vpop.permute.xlu0 %672
  %v674 = vsel %vm160, %v659, %v667
  %v675 = vsel %vm160, %v661, %v669
  %v676 = vsel %vm160, %v663, %v671
  %v677 = vsel %vm160, %v665, %v673
  %v678 = vsel %vm160, %v651, %v659
  %v679 = vsel %vm160, %v653, %v661
  %v680 = vsel %vm160, %v655, %v663
  %v681 = vsel %vm160, %v657, %v665
  %v682 = vsel %vm160, %v643, %v651
  %v683 = vsel %vm160, %v645, %v653
  %v684 = vsel %vm160, %v647, %v655
  %v685 = vsel %vm160, %v649, %v657
  %v686 = vsel %vm160, %v635, %v643
  %v687 = vsel %vm160, %v637, %v645
  %v688 = vsel %vm160, %v639, %v647
  %v689 = vsel %vm160, %v641, %v649
  %v690 = vsel %vm160, %v627, %v635
  %v691 = vsel %vm160, %v629, %v637
  %v692 = vsel %vm160, %v631, %v639
  %v693 = vsel %vm160, %v633, %v641
  %v694 = vsel %vm160, %v667, %v627
  %v695 = vsel %vm160, %v669, %v629
  %v696 = vsel %vm160, %v671, %v631
  %v697 = vsel %vm160, %v673, %v633
  %s698 = scalar_lea.vmem %s1, 3
  %v699 = vld [vmem:[%s698] ss:$8 sm:$0xf]
  %v700 = vld [vmem:[%s698] ss:$8 sm:$0x30]
  %v701 = vor.u32 %v699, %v700
  %v703 = vlaneseq
  %v704 = vshrl.u32 %v703, 7
  %v705 = vsub.s32 0, %v704
  %v706 = vrot.slane %v701, %v705
  %v707 = vlaneseq
  %v708 = vshrl.u32 %v707, 7
  %v709 = vsub.s32 1, %v708
  %v710 = vrot.slane %v701, %v709
  %v711 = vlaneseq
  %v712 = vshrl.u32 %v711, 7
  %v713 = vsub.s32 2, %v712
  %v714 = vrot.slane %v701, %v713
  %v715 = vlaneseq
  %v716 = vshrl.u32 %v715, 7
  %v717 = vsub.s32 3, %v716
  %v718 = vrot.slane %v701, %v717
  %v719 = vlaneseq
  %v720 = vshrl.u32 %v719, 7
  %v721 = vsub.s32 4, %v720
  %v722 = vrot.slane %v701, %v721
  %v723 = vlaneseq
  %v724 = vshrl.u32 %v723, 7
  %v725 = vsub.s32 5, %v724
  %v726 = vrot.slane %v701, %v725
  %v733 = vmul.f32 %v694, %v706
  %v734 = vmul.f32 %v690, %v710
  %v735 = vmul.f32 %v686, %v714
  %v736 = vmul.f32 %v682, %v718
  %v737 = vmul.f32 %v678, %v722
  %v738 = vmul.f32 %v674, %v726
  %v739 = vmul.f32 %v695, %v706
  %v740 = vmul.f32 %v691, %v710
  %v741 = vmul.f32 %v687, %v714
  %v742 = vmul.f32 %v683, %v718
  %v743 = vmul.f32 %v679, %v722
  %v744 = vmul.f32 %v675, %v726
  %v745 = vmul.f32 %v696, %v706
  %v746 = vmul.f32 %v692, %v710
  %v747 = vmul.f32 %v688, %v714
  %v748 = vmul.f32 %v684, %v718
  %v749 = vmul.f32 %v680, %v722
  %v750 = vmul.f32 %v676, %v726
  %v751 = vmul.f32 %v697, %v706
  %v752 = vmul.f32 %v693, %v710
  %v753 = vmul.f32 %v689, %v714
  %v754 = vmul.f32 %v685, %v718
  %v755 = vmul.f32 %v681, %v722
  %v756 = vmul.f32 %v677, %v726
  %v757 = vadd.f32 %v602, %v733
  %v758 = vadd.f32 %v603, %v734
  %v759 = vadd.f32 %v604, %v735
  %v760 = vadd.f32 %v605, %v736
  %v761 = vadd.f32 %v606, %v737
  %v762 = vadd.f32 %v607, %v738
  %v763 = vadd.f32 %v608, %v739
  %v764 = vadd.f32 %v609, %v740
  %v765 = vadd.f32 %v610, %v741
  %v766 = vadd.f32 %v611, %v742
  %v767 = vadd.f32 %v612, %v743
  %v768 = vadd.f32 %v613, %v744
  %v769 = vadd.f32 %v614, %v745
  %v770 = vadd.f32 %v615, %v746
  %v771 = vadd.f32 %v616, %v747
  %v772 = vadd.f32 %v617, %v748
  %v773 = vadd.f32 %v618, %v749
  %v774 = vadd.f32 %v619, %v750
  %v775 = vadd.f32 %v620, %v751
  %v776 = vadd.f32 %v621, %v752
  %v777 = vadd.f32 %v622, %v753
  %v778 = vadd.f32 %v623, %v754
  %v779 = vadd.f32 %v624, %v755
  %v780 = vadd.f32 %v625, %v756
  %s781 = scalar_lea.vmem %s1, 7
  %v782 = vld [vmem:[%s781] ss:$8 sm:$0xf]
  %v783 = vld [vmem:[%s781] ss:$8 sm:$0x30]
  %v784 = vor.u32 %v782, %v783
  %v786 = vlaneseq
  %v787 = vshrl.u32 %v786, 7
  %v788 = vsub.s32 0, %v787
  %v789 = vrot.slane %v784, %v788
  %v790 = vlaneseq
  %v791 = vshrl.u32 %v790, 7
  %v792 = vsub.s32 1, %v791
  %v793 = vrot.slane %v784, %v792
  %v794 = vlaneseq
  %v795 = vshrl.u32 %v794, 7
  %v796 = vsub.s32 2, %v795
  %v797 = vrot.slane %v784, %v796
  %v798 = vlaneseq
  %v799 = vshrl.u32 %v798, 7
  %v800 = vsub.s32 3, %v799
  %v801 = vrot.slane %v784, %v800
  %v802 = vlaneseq
  %v803 = vshrl.u32 %v802, 7
  %v804 = vsub.s32 4, %v803
  %v805 = vrot.slane %v784, %v804
  %v806 = vlaneseq
  %v807 = vshrl.u32 %v806, 7
  %v808 = vsub.s32 5, %v807
  %v809 = vrot.slane %v784, %v808
  %v816 = vmul.f32 %v61, %v789
  %v817 = vmul.f32 %v62, %v793
  %v818 = vmul.f32 %v63, %v797
  %v819 = vmul.f32 %v64, %v801
  %v820 = vmul.f32 %v65, %v805
  %v821 = vmul.f32 %v66, %v809
  %v822 = vmul.f32 %v67, %v789
  %v823 = vmul.f32 %v68, %v793
  %v824 = vmul.f32 %v69, %v797
  %v825 = vmul.f32 %v70, %v801
  %v826 = vmul.f32 %v71, %v805
  %v827 = vmul.f32 %v72, %v809
  %v828 = vmul.f32 %v73, %v789
  %v829 = vmul.f32 %v74, %v793
  %v830 = vmul.f32 %v75, %v797
  %v831 = vmul.f32 %v76, %v801
  %v832 = vmul.f32 %v77, %v805
  %v833 = vmul.f32 %v78, %v809
  %v834 = vmul.f32 %v79, %v789
  %v835 = vmul.f32 %v80, %v793
  %v836 = vmul.f32 %v81, %v797
  %v837 = vmul.f32 %v82, %v801
  %v838 = vmul.f32 %v83, %v805
  %v839 = vmul.f32 %v84, %v809
  %v840 = vadd.f32 %v757, %v816
  %v841 = vadd.f32 %v758, %v817
  %v842 = vadd.f32 %v759, %v818
  %v843 = vadd.f32 %v760, %v819
  %v844 = vadd.f32 %v761, %v820
  %v845 = vadd.f32 %v762, %v821
  %v846 = vadd.f32 %v763, %v822
  %v847 = vadd.f32 %v764, %v823
  %v848 = vadd.f32 %v765, %v824
  %v849 = vadd.f32 %v766, %v825
  %v850 = vadd.f32 %v767, %v826
  %v851 = vadd.f32 %v768, %v827
  %v852 = vadd.f32 %v769, %v828
  %v853 = vadd.f32 %v770, %v829
  %v854 = vadd.f32 %v771, %v830
  %v855 = vadd.f32 %v772, %v831
  %v856 = vadd.f32 %v773, %v832
  %v857 = vadd.f32 %v774, %v833
  %v858 = vadd.f32 %v775, %v834
  %v859 = vadd.f32 %v776, %v835
  %v860 = vadd.f32 %v777, %v836
  %v861 = vadd.f32 %v778, %v837
  %v862 = vadd.f32 %v779, %v838
  %v863 = vadd.f32 %v780, %v839
  %s864 = scalar_lea.vmem %s1, 48
  %v865 = vld [vmem:[%s864] ss:$8 sm:$0xf]
  %v866 = vld [vmem:[%s864] ss:$8 sm:$0x30]
  %v867 = vor.u32 %v865, %v866
  %v869 = vlaneseq
  %v870 = vshrl.u32 %v869, 7
  %v871 = vsub.s32 0, %v870
  %v872 = vrot.slane %v867, %v871
  %v873 = vlaneseq
  %v874 = vshrl.u32 %v873, 7
  %v875 = vsub.s32 1, %v874
  %v876 = vrot.slane %v867, %v875
  %v877 = vlaneseq
  %v878 = vshrl.u32 %v877, 7
  %v879 = vsub.s32 2, %v878
  %v880 = vrot.slane %v867, %v879
  %v881 = vlaneseq
  %v882 = vshrl.u32 %v881, 7
  %v883 = vsub.s32 3, %v882
  %v884 = vrot.slane %v867, %v883
  %v885 = vlaneseq
  %v886 = vshrl.u32 %v885, 7
  %v887 = vsub.s32 4, %v886
  %v888 = vrot.slane %v867, %v887
  %v889 = vlaneseq
  %v890 = vshrl.u32 %v889, 7
  %v891 = vsub.s32 5, %v890
  %v892 = vrot.slane %v867, %v891
  %v899 = vmul.f32 %v86, %v872
  %v900 = vmul.f32 %v87, %v876
  %v901 = vmul.f32 %v88, %v880
  %v902 = vmul.f32 %v89, %v884
  %v903 = vmul.f32 %v90, %v888
  %v904 = vmul.f32 %v91, %v892
  %v905 = vmul.f32 %v92, %v872
  %v906 = vmul.f32 %v93, %v876
  %v907 = vmul.f32 %v94, %v880
  %v908 = vmul.f32 %v95, %v884
  %v909 = vmul.f32 %v96, %v888
  %v910 = vmul.f32 %v97, %v892
  %v911 = vmul.f32 %v98, %v872
  %v912 = vmul.f32 %v99, %v876
  %v913 = vmul.f32 %v100, %v880
  %v914 = vmul.f32 %v101, %v884
  %v915 = vmul.f32 %v102, %v888
  %v916 = vmul.f32 %v103, %v892
  %v917 = vmul.f32 %v104, %v872
  %v918 = vmul.f32 %v105, %v876
  %v919 = vmul.f32 %v106, %v880
  %v920 = vmul.f32 %v107, %v884
  %v921 = vmul.f32 %v108, %v888
  %v922 = vmul.f32 %v109, %v892
  %v923 = vadd.f32 %v840, %v899
  %v924 = vadd.f32 %v841, %v900
  %v925 = vadd.f32 %v842, %v901
  %v926 = vadd.f32 %v843, %v902
  %v927 = vadd.f32 %v844, %v903
  %v928 = vadd.f32 %v845, %v904
  %v929 = vadd.f32 %v846, %v905
  %v930 = vadd.f32 %v847, %v906
  %v931 = vadd.f32 %v848, %v907
  %v932 = vadd.f32 %v849, %v908
  %v933 = vadd.f32 %v850, %v909
  %v934 = vadd.f32 %v851, %v910
  %v935 = vadd.f32 %v852, %v911
  %v936 = vadd.f32 %v853, %v912
  %v937 = vadd.f32 %v854, %v913
  %v938 = vadd.f32 %v855, %v914
  %v939 = vadd.f32 %v856, %v915
  %v940 = vadd.f32 %v857, %v916
  %v941 = vadd.f32 %v858, %v917
  %v942 = vadd.f32 %v859, %v918
  %v943 = vadd.f32 %v860, %v919
  %v944 = vadd.f32 %v861, %v920
  %v945 = vadd.f32 %v862, %v921
  %v946 = vadd.f32 %v863, %v922
  %s947 = scalar_lea.vmem %s1, 6
  %v948 = vld [vmem:[%s947] ss:$8 sm:$0xf]
  %v949 = vld [vmem:[%s947] ss:$8 sm:$0x30]
  %v950 = vor.u32 %v948, %v949
  %v952 = vlaneseq
  %v953 = vshrl.u32 %v952, 7
  %v954 = vsub.s32 0, %v953
  %v955 = vrot.slane %v950, %v954
  %v956 = vlaneseq
  %v957 = vshrl.u32 %v956, 7
  %v958 = vsub.s32 1, %v957
  %v959 = vrot.slane %v950, %v958
  %v960 = vlaneseq
  %v961 = vshrl.u32 %v960, 7
  %v962 = vsub.s32 2, %v961
  %v963 = vrot.slane %v950, %v962
  %v964 = vlaneseq
  %v965 = vshrl.u32 %v964, 7
  %v966 = vsub.s32 3, %v965
  %v967 = vrot.slane %v950, %v966
  %v968 = vlaneseq
  %v969 = vshrl.u32 %v968, 7
  %v970 = vsub.s32 4, %v969
  %v971 = vrot.slane %v950, %v970
  %v972 = vlaneseq
  %v973 = vshrl.u32 %v972, 7
  %v974 = vsub.s32 5, %v973
  %v975 = vrot.slane %v950, %v974
  %v982 = vmul.f32 %v181, %v955
  %v983 = vmul.f32 %v177, %v959
  %v984 = vmul.f32 %v173, %v963
  %v985 = vmul.f32 %v169, %v967
  %v986 = vmul.f32 %v165, %v971
  %v987 = vmul.f32 %v161, %v975
  %v988 = vmul.f32 %v182, %v955
  %v989 = vmul.f32 %v178, %v959
  %v990 = vmul.f32 %v174, %v963
  %v991 = vmul.f32 %v170, %v967
  %v992 = vmul.f32 %v166, %v971
  %v993 = vmul.f32 %v162, %v975
  %v994 = vmul.f32 %v183, %v955
  %v995 = vmul.f32 %v179, %v959
  %v996 = vmul.f32 %v175, %v963
  %v997 = vmul.f32 %v171, %v967
  %v998 = vmul.f32 %v167, %v971
  %v999 = vmul.f32 %v163, %v975
  %v1000 = vmul.f32 %v184, %v955
  %v1001 = vmul.f32 %v180, %v959
  %v1002 = vmul.f32 %v176, %v963
  %v1003 = vmul.f32 %v172, %v967
  %v1004 = vmul.f32 %v168, %v971
  %v1005 = vmul.f32 %v164, %v975
  %v1006 = vadd.f32 %v923, %v982
  %v1007 = vadd.f32 %v924, %v983
  %v1008 = vadd.f32 %v925, %v984
  %v1009 = vadd.f32 %v926, %v985
  %v1010 = vadd.f32 %v927, %v986
  %v1011 = vadd.f32 %v928, %v987
  %v1012 = vadd.f32 %v929, %v988
  %v1013 = vadd.f32 %v930, %v989
  %v1014 = vadd.f32 %v931, %v990
  %v1015 = vadd.f32 %v932, %v991
  %v1016 = vadd.f32 %v933, %v992
  %v1017 = vadd.f32 %v934, %v993
  %v1018 = vadd.f32 %v935, %v994
  %v1019 = vadd.f32 %v936, %v995
  %v1020 = vadd.f32 %v937, %v996
  %v1021 = vadd.f32 %v938, %v997
  %v1022 = vadd.f32 %v939, %v998
  %v1023 = vadd.f32 %v940, %v999
  %v1024 = vadd.f32 %v941, %v1000
  %v1025 = vadd.f32 %v942, %v1001
  %v1026 = vadd.f32 %v943, %v1002
  %v1027 = vadd.f32 %v944, %v1003
  %v1028 = vadd.f32 %v945, %v1004
  %v1029 = vadd.f32 %v946, %v1005
  %1030 = vst [vmem:[%s2] sm:$0xff] %v1006
  %1031 = vst [vmem:[%s2 + $0x8] sm:$0xff] %v1007
  %1032 = vst [vmem:[%s2 + $0x10] sm:$0xff] %v1008
  %1033 = vst [vmem:[%s2 + $0x18] sm:$0xff] %v1009
  %1034 = vst [vmem:[%s2 + $0x20] sm:$0xff] %v1010
  %1035 = vst [vmem:[%s2 + $0x28] sm:$0xff] %v1011
  %1036 = vst [vmem:[%s2 + $0x30] sm:$0xff] %v1012
  %1037 = vst [vmem:[%s2 + $0x38] sm:$0xff] %v1013
  %1038 = vst [vmem:[%s2 + $0x40] sm:$0xff] %v1014
  %1039 = vst [vmem:[%s2 + $0x48] sm:$0xff] %v1015
  %1040 = vst [vmem:[%s2 + $0x50] sm:$0xff] %v1016
  %1041 = vst [vmem:[%s2 + $0x58] sm:$0xff] %v1017
  %1042 = vst [vmem:[%s2 + $0x60] sm:$0xff] %v1018
  %1043 = vst [vmem:[%s2 + $0x68] sm:$0xff] %v1019
  %1044 = vst [vmem:[%s2 + $0x70] sm:$0xff] %v1020
  %1045 = vst [vmem:[%s2 + $0x78] sm:$0xff] %v1021
  %1046 = vst [vmem:[%s2 + $0x80] sm:$0xff] %v1022
  %1047 = vst [vmem:[%s2 + $0x88] sm:$0xff] %v1023
  %1048 = vst [vmem:[%s2 + $0x90] sm:$0xff] %v1024
  %1049 = vst [vmem:[%s2 + $0x98] sm:$0xff] %v1025
  %1050 = vst [vmem:[%s2 + $0xa0] sm:$0xff] %v1026
  %1051 = vst [vmem:[%s2 + $0xa8] sm:$0xff] %v1027
  %1052 = vst [vmem:[%s2 + $0xb0] sm:$0xff] %v1028
  %1053 = vst [vmem:[%s2 + $0xb8] sm:$0xff] %v1029
  // Predicated region
  $region10: #{_dwconv_s2_impl.1} parent=0 // pred_check
    _
  $region11: #{_dwconv_s2_impl.1} parent=0 // pred_check_branch
    %1055 = sbr.rel (0) target = $region13
  $region12: #{_dwconv_s2_impl.1} parent=0 // pred_region
    _
  $region13: #{_dwconv_s2_impl.1} parent=0 // pred_fallthru
    _
  // Predicated region
  $region14: #{_dwconv_s2_impl.1} parent=0 // pred_check
    _
  $region15: #{_dwconv_s2_impl.1} parent=0 // pred_check_branch
    %1057 = sbr.rel (0) target = $region17
  $region16: #{_dwconv_s2_impl.1} parent=0 // pred_region
    _
  $region17: #{_dwconv_s2_impl.1} parent=0 // pred_fallthru
    _

</llo_original>
